<compile_context>
chip_gen: v7x
topology: tpu7x:2x2x1
jax: 0.10.0
libtpu: 0.0.40
codegen_flags: <defaults>
</compile_context>

<pallas_src>
import functools

import jax
import jax.numpy as jnp
from jax.experimental import pallas as pl
from jax.experimental.pallas import tpu as pltpu

LANES = 128


def _pad8(n):
    return max(8, ((n + 7) // 8) * 8)


def _gram_kernel(*refs, b, ce, sq, energy, self_gram):
    # refs = (x_ref, o_ref) on the deduplicated self-Gram path,
    #        (x_ref, y_ref, o_ref) otherwise.
    # x_ref / y_ref : (B*CE, T)   row i*CE + c  == x[i, c, :]
    # o_ref         : (B*B,  T)   row i*B  + j  == out[i, j, :]
    if self_gram:
        x_ref, o_ref = refs
        y_ref = x_ref
    else:
        x_ref, y_ref, o_ref = refs

    # Per-batch (CE, T) channel slabs, cast to f32 slab-by-slab (no full-block
    # f32 copy of bf16 inputs).
    x_slabs = [x_ref[pl.ds(i * ce, ce), :].astype(jnp.float32) for i in range(b)]
    y_slabs = x_slabs if self_gram else [
        y_ref[pl.ds(j * ce, ce), :].astype(jnp.float32) for j in range(b)]

    # energy[i, j, :] = sum_c x[i, c, :] * y[j, c, :] -- per-pair (CE, T)
    # multiply + sublane reduction; no (B, B, CE, T) intermediate.
    e_rows = [[jnp.sum(x_slabs[i] * y_slabs[j], axis=0, keepdims=True)
               for j in range(b)] for i in range(b)]

    if energy:
        out = jnp.concatenate(
            [e_rows[i][j] for i in range(b) for j in range(b)], axis=0)
        o_ref[...] = out.astype(o_ref.dtype)
        return

    # Squared norms.  Self-Gram: they are exactly the diagonal of energy,
    # so reuse it (saves 2*B*CE*T multiplies + two sublane reductions).
    if self_gram:
        sq_x = [e_rows[k][k] for k in range(b)]
        sq_y = sq_x
    else:
        sq_x = [jnp.sum(jnp.square(x_slabs[k]), axis=0, keepdims=True)
                for k in range(b)]
        sq_y = [jnp.sum(jnp.square(y_slabs[k]), axis=0, keepdims=True)
                for k in range(b)]

    rows = []
    for i in range(b):
        for j in range(b):
            # d[i,j] = -2*e[i,j] + ||x_j||^2 + ||y_i||^2   (matches PyTorch)
            if sq:
                # -clamp(d, min=1e-10) == min(-d, -1e-10)  (negate+clamp folded)
                rows.append(jnp.minimum(
                    2.0 * e_rows[i][j] - sq_x[j] - sq_y[i], -1e-10))
            else:
                rows.append(-2.0 * e_rows[i][j] + sq_x[j] + sq_y[i])
    out = jnp.concatenate(rows, axis=0)            # (B*B, T), single dense store
    o_ref[...] = out.astype(o_ref.dtype)


def _vmem_budget_and_limit():
    """Generation-aware VMEM budget + explicit scoped-VMEM limit."""
    cap = 128 * 1024 * 1024
    try:
        cap = int(pltpu.get_tpu_info().vmem_capacity_bytes)
    except Exception:
        pass
    if cap <= 64 * 1024 * 1024:
        budget = 24 * 1024 * 1024        # v7x-class: 64 MiB physical per TC
    else:
        budget = 48 * 1024 * 1024        # v5e / v6e: 128 MiB physical
    limit = min(cap, budget + 8 * 1024 * 1024)
    return budget, limit


def _pick_hw_tile(hw, b, ce, n_inputs, budget):
    """Largest lane tile (multiple of 128) within budget, with >=4 grid steps."""
    in_rows = _pad8(b * ce)
    out_rows = _pad8(b * b)
    per_lane = (
        n_inputs * 2 * in_rows        # double-buffered input pipeline blocks
        + 2 * out_rows                # double-buffered output pipeline blocks
        + n_inputs * b * _pad8(ce)    # live f32 channel slabs
        + 2 * out_rows                # energy/result rows + concatenated output
        + 2 * _pad8(b)                # squared-norm rows
    ) * 4                             # f32 bytes (conservative for bf16 inputs)

    t = budget // per_lane
    t = min(t, 64 * 1024)                          # bound per-step DMA size
    t = max(LANES, (t // LANES) * LANES)

    # Never emit a 1-step grid when hw allows more: aim for >= 4 blocks so
    # double-buffering overlaps DMA/compute and the "parallel" axis feeds
    # both v7x TensorCores.
    if hw >= 4 * LANES:
        t = min(t, max(LANES, (hw // (4 * LANES)) * LANES))
    elif hw >= 2 * LANES:
        t = min(t, max(LANES, (hw // (2 * LANES)) * LANES))
    else:
        t = min(t, hw)                             # tiny hw: one full-extent block
    return t


def gram_matrix_loss(x, y=None, *, sq=True, energy=False):
    """Pallas implementation of GramMatrixLoss.forward."""
    self_gram = (y is None) or (y is x)
    if y is None:
        y = x
    assert x.ndim == 4 and x.shape == y.shape, (x.shape, y.shape)
    B, CE, W, H = x.shape
    hw = W * H

    x2 = x.reshape(B * CE, hw)                     # dense sublane packing
    out_dtype = jnp.promote_types(x.dtype, y.dtype)

    budget, vmem_limit = _vmem_budget_and_limit()
    n_inputs = 1 if self_gram else 2
    T = _pick_hw_tile(hw, B, CE, n_inputs, budget)
    grid = (pl.cdiv(hw, T),)

    in_spec = pl.BlockSpec((B * CE, T), lambda i: (0, i))
    kernel = functools.partial(
        _gram_kernel, b=B, ce=CE, sq=sq, energy=energy, self_gram=self_gram)

    call = pl.pallas_call(
        kernel,
        out_shape=jax.ShapeDtypeStruct((B * B, hw), out_dtype),
        grid_spec=pl.GridSpec(
            grid=grid,
            in_specs=[in_spec] * n_inputs,
            out_specs=pl.BlockSpec((B * B, T), lambda i: (0, i)),
        ),
        compiler_params=pltpu.CompilerParams(
            dimension_semantics=("parallel",),
            vmem_limit_bytes=vmem_limit,
        ),
    )

    if self_gram:
        out = call(x2)                             # single input -> half the read DMA
    else:
        out = call(x2, y.reshape(B * CE, hw))

    return out.reshape(B, B, W, H)


def gram_matrix_loss_ref(x, y=None, *, sq=True, energy=False):
    """Pure-JAX reference matching the PyTorch module."""
    if y is None:
        y = x
    xf = x.astype(jnp.float32)
    yf = y.astype(jnp.float32)
    e = jnp.einsum("icwh,jcwh->ijwh", xf, yf)
    if energy:
        return e
    sq_x = jnp.sum(xf * xf, axis=1)[None, :, :, :]
    sq_y = jnp.sum(yf * yf, axis=1)[:, None, :, :]
    d = -2.0 * e + sq_x + sq_y
    if not sq:
        return d
    return -jnp.maximum(d, 1e-10)


if __name__ == "__main__":
    key = jax.random.PRNGKey(0)
    kx, ky = jax.random.split(key)

    shape = (2, 4, 16, 16)  # (B, CE, W, H) -> hw = 256 -> 2 lane blocks
    x = jax.random.normal(kx, shape, dtype=jnp.float32)
    y = jax.random.normal(ky, shape, dtype=jnp.float32)

    out_xy = gram_matrix_loss(x, y)                   # two-input path
    out_xx = gram_matrix_loss(x)                      # deduplicated self-Gram path
    out_e = gram_matrix_loss(x, y, energy=True)       # bEnergy path
    out_d = gram_matrix_loss(x, y, sq=False)          # sq=False path
    jax.block_until_ready((out_xy, out_xx, out_e, out_d))

    assert out_xy.shape == (2, 2, 16, 16), out_xy.shape
    assert jnp.allclose(out_xy, gram_matrix_loss_ref(x, y), atol=1e-4, rtol=1e-4)
    assert jnp.allclose(out_xx, gram_matrix_loss_ref(x), atol=1e-4, rtol=1e-4)
    assert jnp.allclose(out_e, gram_matrix_loss_ref(x, y, energy=True),
                        atol=1e-4, rtol=1e-4)
    assert jnp.allclose(out_d, gram_matrix_loss_ref(x, y, sq=False),
                        atol=1e-4, rtol=1e-4)

    # Partial last lane block (hw = 400, not a multiple of 128).
    shape2 = (2, 4, 20, 20)
    x2 = jax.random.normal(kx, shape2, dtype=jnp.float32)
    out2 = gram_matrix_loss(x2)
    jax.block_until_ready(out2)
    assert jnp.allclose(out2, gram_matrix_loss_ref(x2), atol=1e-4, rtol=1e-4)

    print("KERNEL_OK")
</pallas_src>

<mosaic_0001>
module attributes {stable_mosaic.version = 11 : i64} {
  func.func @_gram_kernel(%arg0: i32, %arg1: memref<8x128xf32, #tpu.memory_space<vmem>>, %arg2: memref<8x128xf32, #tpu.memory_space<vmem>>, %arg3: memref<4x128xf32, #tpu.memory_space<vmem>>) attributes {dimension_semantics = [#tpu.dimension_semantics<parallel>], iteration_bounds = array<i64: 2>, scalar_prefetch = 0 : i64, scratch_operands = 0 : i64, tpu.core_type = #tpu.core_type<tc>, window_params = [{transform_indices = @transform_0, window_bounds = array<i64: 8, 128>}, {transform_indices = @transform_1, window_bounds = array<i64: 8, 128>}, {transform_indices = @transform_2, window_bounds = array<i64: 4, 128>}]} {
    %c0 = arith.constant 0 : index
    %c0_0 = arith.constant 0 : index
    %0 = vector.load %arg1[%c0, %c0_0] : memref<8x128xf32, #tpu.memory_space<vmem>>, vector<4x128xf32>
    %c4 = arith.constant 4 : index
    %c0_1 = arith.constant 0 : index
    %1 = vector.load %arg1[%c4, %c0_1] : memref<8x128xf32, #tpu.memory_space<vmem>>, vector<4x128xf32>
    %c0_2 = arith.constant 0 : index
    %c0_3 = arith.constant 0 : index
    %2 = vector.load %arg2[%c0_2, %c0_3] : memref<8x128xf32, #tpu.memory_space<vmem>>, vector<4x128xf32>
    %c4_4 = arith.constant 4 : index
    %c0_5 = arith.constant 0 : index
    %3 = vector.load %arg2[%c4_4, %c0_5] : memref<8x128xf32, #tpu.memory_space<vmem>>, vector<4x128xf32>
    %4 = arith.mulf %0, %2 : vector<4x128xf32>
    %cst = arith.constant dense<0.000000e+00> : vector<128xf32>
    %5 = vector.multi_reduction <add>, %4, %cst [0] : vector<4x128xf32> to vector<128xf32>
    %6 = vector.shape_cast %5 : vector<128xf32> to vector<1x128xf32>
    %7 = arith.mulf %0, %3 : vector<4x128xf32>
    %cst_6 = arith.constant dense<0.000000e+00> : vector<128xf32>
    %8 = vector.multi_reduction <add>, %7, %cst_6 [0] : vector<4x128xf32> to vector<128xf32>
    %9 = vector.shape_cast %8 : vector<128xf32> to vector<1x128xf32>
    %10 = arith.mulf %1, %2 : vector<4x128xf32>
    %cst_7 = arith.constant dense<0.000000e+00> : vector<128xf32>
    %11 = vector.multi_reduction <add>, %10, %cst_7 [0] : vector<4x128xf32> to vector<128xf32>
    %12 = vector.shape_cast %11 : vector<128xf32> to vector<1x128xf32>
    %13 = arith.mulf %1, %3 : vector<4x128xf32>
    %cst_8 = arith.constant dense<0.000000e+00> : vector<128xf32>
    %14 = vector.multi_reduction <add>, %13, %cst_8 [0] : vector<4x128xf32> to vector<128xf32>
    %15 = vector.shape_cast %14 : vector<128xf32> to vector<1x128xf32>
    %16 = arith.mulf %0, %0 : vector<4x128xf32>
    %cst_9 = arith.constant dense<0.000000e+00> : vector<128xf32>
    %17 = vector.multi_reduction <add>, %16, %cst_9 [0] : vector<4x128xf32> to vector<128xf32>
    %18 = vector.shape_cast %17 : vector<128xf32> to vector<1x128xf32>
    %19 = arith.mulf %1, %1 : vector<4x128xf32>
    %cst_10 = arith.constant dense<0.000000e+00> : vector<128xf32>
    %20 = vector.multi_reduction <add>, %19, %cst_10 [0] : vector<4x128xf32> to vector<128xf32>
    %21 = vector.shape_cast %20 : vector<128xf32> to vector<1x128xf32>
    %22 = arith.mulf %2, %2 : vector<4x128xf32>
    %cst_11 = arith.constant dense<0.000000e+00> : vector<128xf32>
    %23 = vector.multi_reduction <add>, %22, %cst_11 [0] : vector<4x128xf32> to vector<128xf32>
    %24 = vector.shape_cast %23 : vector<128xf32> to vector<1x128xf32>
    %25 = arith.mulf %3, %3 : vector<4x128xf32>
    %cst_12 = arith.constant dense<0.000000e+00> : vector<128xf32>
    %26 = vector.multi_reduction <add>, %25, %cst_12 [0] : vector<4x128xf32> to vector<128xf32>
    %27 = vector.shape_cast %26 : vector<128xf32> to vector<1x128xf32>
    %cst_13 = arith.constant 2.000000e+00 : f32
    %28 = vector.broadcast %cst_13 : f32 to vector<1x128xf32>
    %29 = arith.mulf %28, %6 : vector<1x128xf32>
    %30 = arith.subf %29, %18 : vector<1x128xf32>
    %31 = arith.subf %30, %24 : vector<1x128xf32>
    %cst_14 = arith.constant -1.000000e-10 : f32
    %32 = vector.broadcast %cst_14 : f32 to vector<1x128xf32>
    %33 = arith.minimumf %31, %32 : vector<1x128xf32>
    %cst_15 = arith.constant 2.000000e+00 : f32
    %34 = vector.broadcast %cst_15 : f32 to vector<1x128xf32>
    %35 = arith.mulf %34, %9 : vector<1x128xf32>
    %36 = arith.subf %35, %21 : vector<1x128xf32>
    %37 = arith.subf %36, %24 : vector<1x128xf32>
    %cst_16 = arith.constant -1.000000e-10 : f32
    %38 = vector.broadcast %cst_16 : f32 to vector<1x128xf32>
    %39 = arith.minimumf %37, %38 : vector<1x128xf32>
    %cst_17 = arith.constant 2.000000e+00 : f32
    %40 = vector.broadcast %cst_17 : f32 to vector<1x128xf32>
    %41 = arith.mulf %40, %12 : vector<1x128xf32>
    %42 = arith.subf %41, %18 : vector<1x128xf32>
    %43 = arith.subf %42, %27 : vector<1x128xf32>
    %cst_18 = arith.constant -1.000000e-10 : f32
    %44 = vector.broadcast %cst_18 : f32 to vector<1x128xf32>
    %45 = arith.minimumf %43, %44 : vector<1x128xf32>
    %cst_19 = arith.constant 2.000000e+00 : f32
    %46 = vector.broadcast %cst_19 : f32 to vector<1x128xf32>
    %47 = arith.mulf %46, %15 : vector<1x128xf32>
    %48 = arith.subf %47, %21 : vector<1x128xf32>
    %49 = arith.subf %48, %27 : vector<1x128xf32>
    %cst_20 = arith.constant -1.000000e-10 : f32
    %50 = vector.broadcast %cst_20 : f32 to vector<1x128xf32>
    %51 = arith.minimumf %49, %50 : vector<1x128xf32>
    %52 = tpu.concatenate %33, %39, %45, %51 in 0 : vector<1x128xf32>, vector<1x128xf32>, vector<1x128xf32>, vector<1x128xf32> -> vector<4x128xf32>
    %c0_21 = arith.constant 0 : index
    %c0_22 = arith.constant 0 : index
    %53 = vector.load %arg3[%c0_21, %c0_22] : memref<4x128xf32, #tpu.memory_space<vmem>>, vector<4x128xf32>
    tpu.vector_store %arg3[%c0_21, %c0_22], %52 {strides = array<i32>} : memref<4x128xf32, #tpu.memory_space<vmem>>, vector<4x128xf32>,
    return
  }
  func.func @transform_0(%arg0: i32) -> (i32, i32) {
    %c0_i32 = arith.constant 0 : i32
    %c0_i32_0 = arith.constant 0 : i32
    return %c0_i32, %arg0 : i32, i32
  }
  func.func @transform_1(%arg0: i32) -> (i32, i32) {
    %c0_i32 = arith.constant 0 : i32
    %c0_i32_0 = arith.constant 0 : i32
    return %c0_i32, %arg0 : i32, i32
  }
  func.func @transform_2(%arg0: i32) -> (i32, i32) {
    %c0_i32 = arith.constant 0 : i32
    %c0_i32_0 = arith.constant 0 : i32
    return %c0_i32, %arg0 : i32, i32
  }
}

</mosaic_0001>

<llo_original>
// kernel: tpu_custom_call.1
$region0: #{tpu_custom_call.1}
  #allocation0 [shape = 'u32[]', space=smem, size = 0x4, offset = 0x4, fixed_abs, tag = 'smem constant byte address 0x4 - core index']
  #allocation1 [shape = 'u32[144,128]{1,0:T(1,128)}', space=vmem, size = 0x12000, scoped, tag = 'internal scratch']
  %s0 = inlined_call_operand.hbm [shape: f32[8,256], index: 0, kind: input, shape index: {}]
  %s1 = inlined_call_operand.hbm [shape: f32[8,256], index: 1, kind: input, shape index: {}]
  %s2 = inlined_call_operand.hbm [shape: f32[4,256], index: 2, kind: output, shape index: {}]
  %s3 = sld [smem:[#allocation0]]
  $region49: #{tpu_custom_call.1} parent=0
    _
  %s5 = ssub.s32 1, %s3
  %s6 = scalar_select 0, %s5, %s3
  $region1: #{tpu_custom_call.1} parent=0
    #allocation2 [shape = 'u8[8192]{0}', space=vmem, size = 0x2000, scoped, tag = 'input window, operand 0']
    #allocation3 [shape = 's32[2]{0}', space=sflag, size = 0x8, scoped, tag = 'scoped memory for tpu_custom_call.1']
    #allocation4 [shape = 's32[2]{0}', space=sflag, size = 0x8, scoped, tag = 'scoped memory for tpu_custom_call.1']
    #allocation5 [shape = 'u8[8192]{0}', space=vmem, size = 0x2000, scoped, tag = 'input window, operand 1']
    #allocation6 [shape = 's32[2]{0}', space=sflag, size = 0x8, scoped, tag = 'scoped memory for tpu_custom_call.1']
    #allocation7 [shape = 'u8[4096]{0}', space=vmem, size = 0x1000, scoped, tag = 'output window, operand 0']
    %7 = vsyncpa [#allocation3], 0
    %s8 = scalar_lea.sflag [#allocation3], 1
    %9 = vsyncpa %s8, 0
    %10 = vsyncpa [#allocation6], 0
    %s11 = scalar_lea.sflag [#allocation6], 1
    %12 = vsyncpa %s11, 0
    %13 = vsyncpa [#allocation4], 0
    %s14 = scalar_lea.sflag [#allocation4], 1
    %15 = vsyncpa %s14, 0
    loop: start=0, step=1, limit=4
    $region2: #{tpu_custom_call.1} parent=1 // loop_pre_header
      _
    $region3: #{tpu_custom_call.1} parent=1 // loop_header
      %s17 = sphi 0, %s21
      %p18 = scmp.ge.s32.totalorder %s17, 4
      %s27 = sphi 0, %s29
      %s30 = sphi 0, %s27
      %s31 = sphi 0, %s30
      %s47 = sphi 0, %s31
      %s53 = sphi 0, %s55
      %s56 = sphi 0, %s53
      %s57 = sphi 0, %s56
      %s73 = sphi 0, %s57
      %s79 = sphi 0, %s81
      %s82 = sphi 0, %s79
      %s83 = sphi 0, %s82
      %s99 = sphi 0, %s83
    $region4: #{tpu_custom_call.1} parent=1 // loop_header_branch
      %20 = sbr.rel (%p18) target = $region8
    $region5: #{tpu_custom_call.1} parent=1 // loop_body
      %s22 = ssub.s32 %s17, 1
      %s23 = ssub.s32 %s17, 2
      %s24 = sadd.s32 %s17, 1
      %s25 = ssub.s32 %s17, %s24
      %p26 = scmp.eq.s32.totalorder %s25, 0
      %s28 = sadd.s32 %s27, 1
      %s29 = scalar_select %p26, %s27, %s28
      %p32 = pneg %p26
      %p33 = scmp.eq.s32.totalorder %s17, 1
      %p34 = por %p32, %p33
      %p35 = scmp.ne.s32.totalorder %s27, %s30
      %p36 = scmp.eq.s32.totalorder %s17, 0
      %p37 = por %p35, %p36
      %p38 = scmp.ne.s32.totalorder %s27, %s30
      %p39 = scmp.eq.s32.totalorder %s22, 1
      %p40 = por %p38, %p39
      %p41 = scmp.ne.s32.totalorder %s30, %s31
      %p42 = scmp.eq.s32.totalorder %s22, 0
      %p43 = por %p41, %p42
      %p44 = scmp.ne.s32.totalorder %s30, %s31
      %p45 = scmp.eq.s32.totalorder %s23, 1
      %p46 = por %p44, %p45
      %p48 = scmp.ne.s32.totalorder %s31, %s47
      %p49 = scmp.eq.s32.totalorder %s23, 0
      %p50 = por %p48, %p49
      %s51 = ssub.s32 %s17, %s24
      %p52 = scmp.eq.s32.totalorder %s51, 0
      %s54 = sadd.s32 %s53, 1
      %s55 = scalar_select %p52, %s53, %s54
      %p58 = pneg %p52
      %p59 = scmp.eq.s32.totalorder %s17, 1
      %p60 = por %p58, %p59
      %p61 = scmp.ne.s32.totalorder %s53, %s56
      %p62 = scmp.eq.s32.totalorder %s17, 0
      %p63 = por %p61, %p62
      %p64 = scmp.ne.s32.totalorder %s53, %s56
      %p65 = scmp.eq.s32.totalorder %s22, 1
      %p66 = por %p64, %p65
      %p67 = scmp.ne.s32.totalorder %s56, %s57
      %p68 = scmp.eq.s32.totalorder %s22, 0
      %p69 = por %p67, %p68
      %p70 = scmp.ne.s32.totalorder %s56, %s57
      %p71 = scmp.eq.s32.totalorder %s23, 1
      %p72 = por %p70, %p71
      %p74 = scmp.ne.s32.totalorder %s57, %s73
      %p75 = scmp.eq.s32.totalorder %s23, 0
      %p76 = por %p74, %p75
      %s77 = ssub.s32 %s17, %s24
      %p78 = scmp.eq.s32.totalorder %s77, 0
      %s80 = sadd.s32 %s79, 1
      %s81 = scalar_select %p78, %s79, %s80
      %p84 = pneg %p78
      %p85 = scmp.eq.s32.totalorder %s17, 1
      %p86 = por %p84, %p85
      %p87 = scmp.ne.s32.totalorder %s79, %s82
      %p88 = scmp.eq.s32.totalorder %s17, 0
      %p89 = por %p87, %p88
      %p90 = scmp.ne.s32.totalorder %s79, %s82
      %p91 = scmp.eq.s32.totalorder %s22, 1
      %p92 = por %p90, %p91
      %p93 = scmp.ne.s32.totalorder %s82, %s83
      %p94 = scmp.eq.s32.totalorder %s22, 0
      %p95 = por %p93, %p94
      %p96 = scmp.ne.s32.totalorder %s82, %s83
      %p97 = scmp.eq.s32.totalorder %s23, 1
      %p98 = por %p96, %p97
      %p100 = scmp.ne.s32.totalorder %s83, %s99
      %p101 = scmp.eq.s32.totalorder %s23, 0
      %p102 = por %p100, %p101
      %p103 = scmp.le.s32.totalorder 1, %s17
      %p104 = scmp.lt.s32.totalorder %s17, 3
      %p105 = pnand %p103, %p104
      %p106 = pneg %p105
      // Predicated region
      $region9: #{tpu_custom_call.1} parent=5 // pred_check
        _
      $region10: #{tpu_custom_call.1} parent=5 // pred_check_branch
        %108 = sbr.rel (%p105) target = $region12
      $region11: #{tpu_custom_call.1} parent=5 // pred_region
        %s109 = ssub.s32 %s17, 1
      $region12: #{tpu_custom_call.1} parent=5 // pred_fallthru
        _
      %p110 = scmp.lt.s32.totalorder %s17, 2
      // Predicated region
      $region13: #{tpu_custom_call.1} parent=5 // pred_check
        %p111 = pneg %p110
      $region14: #{tpu_custom_call.1} parent=5 // pred_check_branch
        %113 = sbr.rel (%p111) target = $region16
      $region15: #{tpu_custom_call.1} parent=5 // pred_region
        // Predicated region
        $region17: #{tpu_custom_call.1} parent=15 // pred_check
          %p114 = pneg %p37
        $region18: #{tpu_custom_call.1} parent=15 // pred_check_branch
          %116 = sbr.rel (%p114) target = $region20
        $region19: #{tpu_custom_call.1} parent=15 // pred_region
          %s117 = sand.u32 %s27, 1
          %s118 = scalar_lea.sflag [#allocation3], %s117
          %s119 = sand.u32 %s27, 1
          %s120 = smul.addr %s119, 8
          %s121 = scalar_lea.vmem [#allocation2], %s120
          %s123 = ssub.s32 128, 128
          %124 = vsyncadd %s118, %s123
          %s125 = smul.addr %s17, 128
          %s126 = scalar_lea.hbm %s0, %s125
          %s128 = sshll.u32 %s121, 4
          %s129 = int_to_ptr.vmem [resolvable:$true] %s128
          %131 = dma.hbm_to_vmem [thread:$0]  %s126, 128, %s129, %s118
        $region20: #{tpu_custom_call.1} parent=15 // pred_fallthru
          _
        // Predicated region
        $region21: #{tpu_custom_call.1} parent=15 // pred_check
          %p132 = pneg %p63
        $region22: #{tpu_custom_call.1} parent=15 // pred_check_branch
          %134 = sbr.rel (%p132) target = $region24
        $region23: #{tpu_custom_call.1} parent=15 // pred_region
          %s135 = sand.u32 %s53, 1
          %s136 = scalar_lea.sflag [#allocation6], %s135
          %s137 = sand.u32 %s53, 1
          %s138 = smul.addr %s137, 8
          %s139 = scalar_lea.vmem [#allocation5], %s138
          %s141 = ssub.s32 128, 128
          %142 = vsyncadd %s136, %s141
          %s143 = smul.addr %s17, 128
          %s144 = scalar_lea.hbm %s1, %s143
          %s146 = sshll.u32 %s139, 4
          %s147 = int_to_ptr.vmem [resolvable:$true] %s146
          %149 = dma.hbm_to_vmem [thread:$0]  %s144, 128, %s147, %s136
        $region24: #{tpu_custom_call.1} parent=15 // pred_fallthru
          _
      $region16: #{tpu_custom_call.1} parent=5 // pred_fallthru
        _
      %p150 = scmp.le.s32.totalorder 1, %s17
      %p151 = scmp.lt.s32.totalorder %s17, 3
      %p152 = pnand %p150, %p151
      %p153 = pneg %p152
      // Predicated region
      $region25: #{tpu_custom_call.1} parent=5 // pred_check
        _
      $region26: #{tpu_custom_call.1} parent=5 // pred_check_branch
        %155 = sbr.rel (%p152) target = $region28
      $region27: #{tpu_custom_call.1} parent=5 // pred_region
        %s156 = ssub.s32 %s17, 1
        %s157 = sand.u32 %s30, 1
        %s158 = scalar_lea.sflag [#allocation3], %s157
        %s159 = sand.u32 %s30, 1
        %s160 = smul.addr %s159, 8
        %s161 = scalar_lea.vmem [#allocation2], %s160
        // Predicated region
        $region29: #{tpu_custom_call.1} parent=27 // pred_check
          %p162 = pneg %p43
        $region30: #{tpu_custom_call.1} parent=27 // pred_check_branch
          %164 = sbr.rel (%p162) target = $region32
        $region31: #{tpu_custom_call.1} parent=27 // pred_region
          %165 = dma.done %s158, 128
        $region32: #{tpu_custom_call.1} parent=27 // pred_fallthru
          _
        %s166 = sand.u32 %s56, 1
        %s167 = scalar_lea.sflag [#allocation6], %s166
        %s168 = sand.u32 %s56, 1
        %s169 = smul.addr %s168, 8
        %s170 = scalar_lea.vmem [#allocation5], %s169
        // Predicated region
        $region33: #{tpu_custom_call.1} parent=27 // pred_check
          %p171 = pneg %p69
        $region34: #{tpu_custom_call.1} parent=27 // pred_check_branch
          %173 = sbr.rel (%p171) target = $region36
        $region35: #{tpu_custom_call.1} parent=27 // pred_region
          %174 = dma.done %s167, 128
        $region36: #{tpu_custom_call.1} parent=27 // pred_fallthru
          _
        %s175 = sand.u32 %s30, 1
        %s176 = scalar_lea.sflag [#allocation3], %s175
        %s177 = sand.u32 %s30, 1
        %s178 = smul.addr %s177, 8
        %s179 = scalar_lea.vmem [#allocation2], %s178
        %p180 = pneg %p43
        %p181 = pneg %p40
        %s182 = sand.u32 %s56, 1
        %s183 = scalar_lea.sflag [#allocation6], %s182
        %s184 = sand.u32 %s56, 1
        %s185 = smul.addr %s184, 8
        %s186 = scalar_lea.vmem [#allocation5], %s185
        %p187 = pneg %p69
        %p188 = pneg %p66
        %p189 = pneg %p95
        %p190 = pneg %p92
        %s191 = sand.u32 %s82, 1
        %s192 = scalar_lea.sflag [#allocation4], %s191
        %s193 = sand.u32 %s82, 1
        %s194 = smul.addr %s193, 4
        %s195 = scalar_lea.vmem [#allocation7], %s194
        %v196 = vld [vmem:[%s161] sm:$0xf]
        %v197 = vld [vmem:[%s161 + $0x4] sm:$0xf]
        %v198 = vld [vmem:[%s170] sm:$0xf]
        %v199 = vld [vmem:[%s170 + $0x4] sm:$0xf]
        %v200 = vmul.f32 %v196, %v198
        %vm201 = vcmask 1043456
        %v202 = vsel %vm201, %v200, 0.0
        %v203 = vrot.slane %v202, 4
        %v204 = vadd.f32 %v202, %v203
        %v205 = vrot.slane %v204, 2
        %v206 = vadd.f32 %v204, %v205
        %v207 = vrot.slane %v206, 1
        %v208 = vadd.f32 %v206, %v207
        %v209 = vmul.f32 %v196, %v199
        %v210 = vsel %vm201, %v209, 0.0
        %v211 = vrot.slane %v210, 4
        %v212 = vadd.f32 %v210, %v211
        %v213 = vrot.slane %v212, 2
        %v214 = vadd.f32 %v212, %v213
        %v215 = vrot.slane %v214, 1
        %v216 = vadd.f32 %v214, %v215
        %v217 = vmul.f32 %v197, %v198
        %v218 = vsel %vm201, %v217, 0.0
        %v219 = vrot.slane %v218, 4
        %v220 = vadd.f32 %v218, %v219
        %v221 = vrot.slane %v220, 2
        %v222 = vadd.f32 %v220, %v221
        %v223 = vrot.slane %v222, 1
        %v224 = vadd.f32 %v222, %v223
        %v225 = vmul.f32 %v197, %v199
        %v226 = vsel %vm201, %v225, 0.0
        %v227 = vrot.slane %v226, 4
        %v228 = vadd.f32 %v226, %v227
        %v229 = vrot.slane %v228, 2
        %v230 = vadd.f32 %v228, %v229
        %v231 = vrot.slane %v230, 1
        %v232 = vadd.f32 %v230, %v231
        %v233 = vmul.f32 %v196, %v196
        %v234 = vsel %vm201, %v233, 0.0
        %v235 = vrot.slane %v234, 4
        %v236 = vadd.f32 %v234, %v235
        %v237 = vrot.slane %v236, 2
        %v238 = vadd.f32 %v236, %v237
        %v239 = vrot.slane %v238, 1
        %v240 = vadd.f32 %v238, %v239
        %v241 = vmul.f32 %v197, %v197
        %v242 = vsel %vm201, %v241, 0.0
        %v243 = vrot.slane %v242, 4
        %v244 = vadd.f32 %v242, %v243
        %v245 = vrot.slane %v244, 2
        %v246 = vadd.f32 %v244, %v245
        %v247 = vrot.slane %v246, 1
        %v248 = vadd.f32 %v246, %v247
        %v249 = vmul.f32 %v198, %v198
        %v250 = vsel %vm201, %v249, 0.0
        %v251 = vrot.slane %v250, 4
        %v252 = vadd.f32 %v250, %v251
        %v253 = vrot.slane %v252, 2
        %v254 = vadd.f32 %v252, %v253
        %v255 = vrot.slane %v254, 1
        %v256 = vadd.f32 %v254, %v255
        %v257 = vmul.f32 %v199, %v199
        %v258 = vsel %vm201, %v257, 0.0
        %v259 = vrot.slane %v258, 4
        %v260 = vadd.f32 %v258, %v259
        %v261 = vrot.slane %v260, 2
        %v262 = vadd.f32 %v260, %v261
        %v263 = vrot.slane %v262, 1
        %v264 = vadd.f32 %v262, %v263
        %v265 = vmul.f32 %v208, 2.0
        %v266 = vsub.f32 %v265, %v240
        %v267 = vsub.f32 %v266, %v256
        %v268 = vmin.f32 %v267, -1e-10
        %v269 = vmul.f32 %v216, 2.0
        %v270 = vsub.f32 %v269, %v248
        %v271 = vsub.f32 %v270, %v256
        %v272 = vmin.f32 %v271, -1e-10
        %v273 = vmul.f32 %v224, 2.0
        %v274 = vsub.f32 %v273, %v240
        %v275 = vsub.f32 %v274, %v264
        %v276 = vmin.f32 %v275, -1e-10
        %v277 = vmul.f32 %v232, 2.0
        %v278 = vsub.f32 %v277, %v248
        %v279 = vsub.f32 %v278, %v264
        %v280 = vmin.f32 %v279, -1e-10
        %vm281 = vcmask 1040384
        %v282 = vsel %vm281, %v268, %v272
        %vm283 = vcmask 1041408
        %v284 = vsel %vm283, %v282, %v276
        %vm285 = vcmask 1042432
        %v286 = vsel %vm285, %v284, %v280
        %287 = vst [vmem:[%s195] sm:$0xf] %v286
        %s288 = sand.u32 %s82, 1
        %s289 = scalar_lea.sflag [#allocation4], %s288
        %s290 = sand.u32 %s82, 1
        %s291 = smul.addr %s290, 4
        %s292 = scalar_lea.vmem [#allocation7], %s291
        // Predicated region
        $region37: #{tpu_custom_call.1} parent=27 // pred_check
          %p293 = pneg %p92
        $region38: #{tpu_custom_call.1} parent=27 // pred_check_branch
          %295 = sbr.rel (%p293) target = $region40
        $region39: #{tpu_custom_call.1} parent=27 // pred_region
          %s297 = ssub.s32 64, 64
          %298 = vsyncadd %s289, %s297
          %s299 = smul.addr %s22, 64
          %s300 = scalar_lea.hbm %s2, %s299
          %s302 = sshll.u32 %s292, 4
          %s303 = int_to_ptr.vmem [resolvable:$true] %s302
          %305 = dma.vmem_to_hbm [thread:$0]  %s303, 64, %s300, %s289
        $region40: #{tpu_custom_call.1} parent=27 // pred_fallthru
          _
      $region28: #{tpu_custom_call.1} parent=5 // pred_fallthru
        _
      %p306 = scmp.le.s32.totalorder 2, %s17
      // Predicated region
      $region41: #{tpu_custom_call.1} parent=5 // pred_check
        %p307 = pneg %p306
      $region42: #{tpu_custom_call.1} parent=5 // pred_check_branch
        %309 = sbr.rel (%p307) target = $region44
      $region43: #{tpu_custom_call.1} parent=5 // pred_region
        %s310 = ssub.s32 %s17, 2
        // Predicated region
        $region45: #{tpu_custom_call.1} parent=43 // pred_check
          %p311 = pneg %p98
        $region46: #{tpu_custom_call.1} parent=43 // pred_check_branch
          %313 = sbr.rel (%p311) target = $region48
        $region47: #{tpu_custom_call.1} parent=43 // pred_region
          %s314 = sand.u32 %s83, 1
          %s315 = scalar_lea.sflag [#allocation4], %s314
          %s316 = sand.u32 %s83, 1
          %s317 = smul.addr %s316, 4
          %s318 = scalar_lea.vmem [#allocation7], %s317
          %319 = dma.done %s315, 64
        $region48: #{tpu_custom_call.1} parent=43 // pred_fallthru
          _
      $region44: #{tpu_custom_call.1} parent=5 // pred_fallthru
        _
    $region6: #{tpu_custom_call.1} parent=1 // loop_footer
      %s21 = sadd.s32 1, %s17
    $region7: #{tpu_custom_call.1} parent=1 // loop_footer_branch
      %16 = sbr.rel target = $region3
    $region8: #{tpu_custom_call.1} parent=1 // loop_exit
      _
    %320 = vsyncpa [#allocation3], 1
    %s321 = scalar_lea.sflag [#allocation3], 1
    %322 = vsyncpa %s321, 1
    %323 = vsyncpa [#allocation6], 1
    %s324 = scalar_lea.sflag [#allocation6], 1
    %325 = vsyncpa %s324, 1
    %326 = vsyncpa [#allocation4], 1
    %s327 = scalar_lea.sflag [#allocation4], 1
    %328 = vsyncpa %s327, 1

</llo_original>
